<compile_context>
chip_gen: v7x
topology: tpu7x:2x2x1
jax: 0.10.0
libtpu: 0.0.40
codegen_flags: <defaults>
</compile_context>

<pallas_src>
import jax
import jax.numpy as jnp
from jax import lax
from jax.experimental import pallas as pl
from jax.experimental.pallas import tpu as pltpu

LANE = 128
SUBLANE = 8


def _round_up(x, m):
    return (x + m - 1) // m * m


def _make_kernel(seq_len):
    """Fused forward kernel (one batch tile per grid step).

    x_ref     : [TB, Ds]   f32   feature_stack_buff tile
    pos_ref   : [TB, S]    i32   feature_pos tile
    w_sb_ref  : [Ds, 128]  bf16  stack-buff projection (H padded to 128)
    w_emb_ref : [Vp, 128]  bf16  folded (emb @ W_pos) / seq_len
    w_out_ref : [128, 128] bf16  output projection (H, C padded to 128)
    b_ref     : [2, 128]   f32   row 0 = fused input bias, row 1 = output bias
    out_ref   : [TB, 128]  f32
    """

    def kernel(x_ref, pos_ref, w_sb_ref, w_emb_ref, w_out_ref, b_ref, out_ref):
        tb = x_ref.shape[0]
        vp = w_emb_ref.shape[0]

        # One-hot position counts accumulated into a narrow [TB, Vp] buffer
        # (pure VPU; the 1/seq_len of the mean is folded into w_emb_ref).
        pos = pos_ref[...]                                        # [TB, S] i32
        lanes = lax.broadcasted_iota(jnp.int32, (tb, vp), 1)      # hoisted once
        counts = jnp.zeros((tb, vp), jnp.float32)
        for s in range(seq_len):                                  # small static unroll
            counts = counts + (pos[:, s:s + 1] == lanes).astype(jnp.float32)
        # TODO(synk): for large seq_len / batch tiles switch this to
        # lax.fori_loop(..., unroll=True) to bound vreg live ranges.

        biases = b_ref[...]                                       # [2, 128] f32

        # First GEMM split into two K-partials (identical MXU work, no x pad);
        # bf16 operands, f32 accumulation.
        acc = jnp.dot(x_ref[...].astype(jnp.bfloat16), w_sb_ref[...],
                      preferred_element_type=jnp.float32)
        acc = acc + jnp.dot(counts.astype(jnp.bfloat16), w_emb_ref[...],
                            preferred_element_type=jnp.float32)
        hidden = jnp.maximum(acc + biases[0:1, :], 0.0)           # f32 epilogue

        out_ref[...] = (
            jnp.dot(hidden.astype(jnp.bfloat16), w_out_ref[...],
                    preferred_element_type=jnp.float32)
            + biases[1:2, :]
        )

    return kernel


def prepare_params(params, seq_len, lane=LANE):
    """One-time weight transform (math identical to the PyTorch module):
      * fold (emb @ W_pos) / seq_len into a per-vocab projection (in f32),
      * fuse the two input biases,
      * zero-pad hidden/class dims to 128 lanes, vocab dim to a sublane
        multiple, and store matmul weights as bf16 (biases stay f32)."""
    emb, w_sb, b_sb = params["emb"], params["w_sb"], params["b_sb"]
    w_pos, b_pos = params["w_pos"], params["b_pos"]
    w_out, b_out = params["w_out"], params["b_out"]

    V, _De = emb.shape
    Ds, H = w_sb.shape
    C = w_out.shape[1]
    assert H <= lane and C <= lane, "pad-to-128 path assumes H, C <= 128"
    Hp = Cp = lane
    Vp = _round_up(V, SUBLANE)

    # mean(emb[pos]) @ W_pos == counts @ ((emb @ W_pos) / seq_len); fold in f32.
    emb_proj = (emb.astype(jnp.float32) @ w_pos.astype(jnp.float32)) / float(seq_len)

    w_sb_p = jnp.pad(w_sb, ((0, 0), (0, Hp - H))).astype(jnp.bfloat16)          # [Ds, Hp]
    w_emb_p = jnp.pad(emb_proj, ((0, Vp - V), (0, Hp - H))).astype(jnp.bfloat16)  # [Vp, Hp]
    w_out_p = jnp.pad(w_out, ((0, Hp - H), (0, Cp - C))).astype(jnp.bfloat16)    # [Hp, Cp]

    b_in = jnp.pad(b_sb + b_pos, ((0, 0), (0, Hp - H)))                          # [1, Hp]
    b_out_p = jnp.pad(b_out, ((0, 0), (0, Cp - C)))                              # [1, Cp]
    b_slab = jnp.concatenate([b_in, b_out_p], axis=0).astype(jnp.float32)        # [2, 128]

    return {
        "w_sb": w_sb_p,
        "w_emb": w_emb_p,
        "w_out": w_out_p,
        "b_slab": b_slab,
        "dims": {"Ds": Ds, "V": V, "Vp": Vp, "H": H, "C": C,
                 "Hp": Hp, "Cp": Cp, "S": seq_len},
    }


def model_mean_forward(feature_stack_buff, feature_pos, prep, *, max_batch_tile=256):
    d = prep["dims"]
    B, Ds = feature_stack_buff.shape
    S = feature_pos.shape[1]
    assert Ds == d["Ds"] and S == d["S"]

    # Batch tile: multiple of 8 sublanes, bounded so the in-kernel one-hot loop
    # stays comfortably inside the vreg file.
    TB = min(max_batch_tile, _round_up(B, SUBLANE))
    pB = _round_up(B, TB)

    x = feature_stack_buff.astype(jnp.float32)
    pos = feature_pos.astype(jnp.int32)
    if pB != B:
        x = jnp.pad(x, ((0, pB - B), (0, 0)))
        pos = jnp.pad(pos, ((0, pB - B), (0, 0)))   # index 0 is valid; rows discarded below

    grid = (pB // TB,)
    flops = 2 * pB * (Ds + d["Vp"] + d["Hp"]) * d["Hp"]
    bytes_accessed = (
        pB * (Ds * 4 + S * 4 + d["Cp"] * 4)                       # x + pos in, out
        + (Ds + d["Vp"] + d["Hp"]) * d["Hp"] * 2                  # bf16 weight slabs
        + 2 * d["Hp"] * 4                                         # biases
    )

    out_padded = pl.pallas_call(
        _make_kernel(S),
        out_shape=jax.ShapeDtypeStruct((pB, d["Cp"]), jnp.float32),
        grid=grid,
        in_specs=[
            pl.BlockSpec((TB, Ds), lambda i: (i, 0)),             # x tile
            pl.BlockSpec((TB, S), lambda i: (i, 0)),              # pos tile
            pl.BlockSpec((Ds, d["Hp"]), lambda i: (0, 0)),        # W_sb (resident)
            pl.BlockSpec((d["Vp"], d["Hp"]), lambda i: (0, 0)),   # W_emb (resident)
            pl.BlockSpec((d["Hp"], d["Cp"]), lambda i: (0, 0)),   # W_out (resident)
            pl.BlockSpec((2, d["Hp"]), lambda i: (0, 0)),         # biases (resident)
        ],
        out_specs=pl.BlockSpec((TB, d["Cp"]), lambda i: (i, 0)),
        compiler_params=pltpu.CompilerParams(
            dimension_semantics=("parallel",)),
        cost_estimate=pl.CostEstimate(
            flops=flops, transcendentals=0, bytes_accessed=bytes_accessed),
    )(x, pos, prep["w_sb"], prep["w_emb"], prep["w_out"], prep["b_slab"])

    return out_padded[:B, : d["C"]]


def init_params(key, pos_vocab_size, pos_embedding_dim, stack_buff_dim,
                hidden_dim, class_size):
    """Deterministic synthetic init. Linear weights stored already transposed
    ([in, out]) so the math is x @ W + b (same as PyTorch x @ W_pt.T + b)."""
    ks = jax.random.split(key, 7)
    scale = 0.1
    return {
        "emb":   scale * jax.random.normal(ks[0], (pos_vocab_size, pos_embedding_dim), jnp.float32),
        "w_sb":  scale * jax.random.normal(ks[1], (stack_buff_dim, hidden_dim), jnp.float32),
        "b_sb":  scale * jax.random.normal(ks[2], (1, hidden_dim), jnp.float32),
        "w_pos": scale * jax.random.normal(ks[3], (pos_embedding_dim, hidden_dim), jnp.float32),
        "b_pos": scale * jax.random.normal(ks[4], (1, hidden_dim), jnp.float32),
        "w_out": scale * jax.random.normal(ks[5], (hidden_dim, class_size), jnp.float32),
        "b_out": scale * jax.random.normal(ks[6], (1, class_size), jnp.float32),
    }


def _reference_forward(feature_stack_buff, feature_pos, params):
    """Pure-JAX f32 reference mirroring the PyTorch forward."""
    emb = jnp.take(params["emb"], feature_pos, axis=0)
    emb_mean = jnp.mean(emb, axis=1)
    h_sb = feature_stack_buff @ params["w_sb"] + params["b_sb"]
    h_pos = emb_mean @ params["w_pos"] + params["b_pos"]
    hidden = jnp.maximum(h_sb + h_pos, 0.0)
    return hidden @ params["w_out"] + params["b_out"]


if __name__ == "__main__":
    B = 8
    seq_len = 8
    pos_vocab_size = 16
    pos_embedding_dim = 32
    stack_buff_dim = 32
    hidden_dim = 64
    class_size = 16

    key = jax.random.PRNGKey(0)
    k_params, k_x, k_pos = jax.random.split(key, 3)

    params = init_params(k_params, pos_vocab_size, pos_embedding_dim,
                         stack_buff_dim, hidden_dim, class_size)
    prep = prepare_params(params, seq_len)

    feature_stack_buff = jax.random.normal(k_x, (B, stack_buff_dim), jnp.float32)
    feature_pos = jax.random.randint(k_pos, (B, seq_len), 0, pos_vocab_size, jnp.int32)

    out = model_mean_forward(feature_stack_buff, feature_pos, prep)
    out = jax.block_until_ready(out)

    ref = _reference_forward(feature_stack_buff, feature_pos, params)
    assert out.shape == (B, class_size)
    # bf16 MXU operands (f32 accumulation) vs the f32 reference -> looser tolerance
    assert jnp.allclose(out, ref, atol=3e-2, rtol=3e-2), "mismatch vs reference"

    print("KERNEL_OK")
</pallas_src>

<mosaic_0001>
module attributes {stable_mosaic.version = 11 : i64} {
  func.func @kernel(%arg0: i32, %arg1: memref<8x32xf32, #tpu.memory_space<vmem>>, %arg2: memref<8x8xi32, #tpu.memory_space<vmem>>, %arg3: memref<32x128xbf16, #tpu.memory_space<vmem>>, %arg4: memref<16x128xbf16, #tpu.memory_space<vmem>>, %arg5: memref<128x128xbf16, #tpu.memory_space<vmem>>, %arg6: memref<2x128xf32, #tpu.memory_space<vmem>>, %arg7: memref<8x128xf32, #tpu.memory_space<vmem>>) attributes {dimension_semantics = [#tpu.dimension_semantics<parallel>], iteration_bounds = array<i64: 1>, scalar_prefetch = 0 : i64, scratch_operands = 0 : i64, tpu.core_type = #tpu.core_type<tc>, window_params = [{transform_indices = @transform_0, window_bounds = array<i64: 8, 32>}, {transform_indices = @transform_1, window_bounds = array<i64: 8, 8>}, {pipeline_mode = #tpu.pipeline_mode<synchronous>, transform_indices = @transform_2, window_bounds = array<i64: 32, 128>}, {pipeline_mode = #tpu.pipeline_mode<synchronous>, transform_indices = @transform_3, window_bounds = array<i64: 16, 128>}, {pipeline_mode = #tpu.pipeline_mode<synchronous>, transform_indices = @transform_4, window_bounds = array<i64: 128, 128>}, {pipeline_mode = #tpu.pipeline_mode<synchronous>, transform_indices = @transform_5, window_bounds = array<i64: 2, 128>}, {transform_indices = @transform_6, window_bounds = array<i64: 8, 128>}]} {
    %c0 = arith.constant 0 : index
    %c0_0 = arith.constant 0 : index
    %0 = vector.load %arg2[%c0, %c0_0] : memref<8x8xi32, #tpu.memory_space<vmem>>, vector<8x8xi32>
    %1 = tpu.iota {dimensions = array<i32: 1>} : vector<8x16xi32>
    %cst = arith.constant 0.000000e+00 : f32
    %2 = vector.broadcast %cst : f32 to vector<8x16xf32>
    %3 = vector.extract_strided_slice %0 {offsets = [0, 0], sizes = [8, 1], strides = [1, 1]} : vector<8x8xi32> to vector<8x1xi32>
    %4 = vector.broadcast %3 : vector<8x1xi32> to vector<8x16xi32>
    %5 = arith.cmpi eq, %4, %1 : vector<8x16xi32>
    %6 = arith.extui %5 : vector<8x16xi1> to vector<8x16xi32>
    %7 = arith.sitofp %6 : vector<8x16xi32> to vector<8x16xf32>
    %8 = arith.addf %2, %7 : vector<8x16xf32>
    %9 = vector.extract_strided_slice %0 {offsets = [0, 1], sizes = [8, 1], strides = [1, 1]} : vector<8x8xi32> to vector<8x1xi32>
    %10 = vector.broadcast %9 : vector<8x1xi32> to vector<8x16xi32>
    %11 = arith.cmpi eq, %10, %1 : vector<8x16xi32>
    %12 = arith.extui %11 : vector<8x16xi1> to vector<8x16xi32>
    %13 = arith.sitofp %12 : vector<8x16xi32> to vector<8x16xf32>
    %14 = arith.addf %8, %13 : vector<8x16xf32>
    %15 = vector.extract_strided_slice %0 {offsets = [0, 2], sizes = [8, 1], strides = [1, 1]} : vector<8x8xi32> to vector<8x1xi32>
    %16 = vector.broadcast %15 : vector<8x1xi32> to vector<8x16xi32>
    %17 = arith.cmpi eq, %16, %1 : vector<8x16xi32>
    %18 = arith.extui %17 : vector<8x16xi1> to vector<8x16xi32>
    %19 = arith.sitofp %18 : vector<8x16xi32> to vector<8x16xf32>
    %20 = arith.addf %14, %19 : vector<8x16xf32>
    %21 = vector.extract_strided_slice %0 {offsets = [0, 3], sizes = [8, 1], strides = [1, 1]} : vector<8x8xi32> to vector<8x1xi32>
    %22 = vector.broadcast %21 : vector<8x1xi32> to vector<8x16xi32>
    %23 = arith.cmpi eq, %22, %1 : vector<8x16xi32>
    %24 = arith.extui %23 : vector<8x16xi1> to vector<8x16xi32>
    %25 = arith.sitofp %24 : vector<8x16xi32> to vector<8x16xf32>
    %26 = arith.addf %20, %25 : vector<8x16xf32>
    %27 = vector.extract_strided_slice %0 {offsets = [0, 4], sizes = [8, 1], strides = [1, 1]} : vector<8x8xi32> to vector<8x1xi32>
    %28 = vector.broadcast %27 : vector<8x1xi32> to vector<8x16xi32>
    %29 = arith.cmpi eq, %28, %1 : vector<8x16xi32>
    %30 = arith.extui %29 : vector<8x16xi1> to vector<8x16xi32>
    %31 = arith.sitofp %30 : vector<8x16xi32> to vector<8x16xf32>
    %32 = arith.addf %26, %31 : vector<8x16xf32>
    %33 = vector.extract_strided_slice %0 {offsets = [0, 5], sizes = [8, 1], strides = [1, 1]} : vector<8x8xi32> to vector<8x1xi32>
    %34 = vector.broadcast %33 : vector<8x1xi32> to vector<8x16xi32>
    %35 = arith.cmpi eq, %34, %1 : vector<8x16xi32>
    %36 = arith.extui %35 : vector<8x16xi1> to vector<8x16xi32>
    %37 = arith.sitofp %36 : vector<8x16xi32> to vector<8x16xf32>
    %38 = arith.addf %32, %37 : vector<8x16xf32>
    %39 = vector.extract_strided_slice %0 {offsets = [0, 6], sizes = [8, 1], strides = [1, 1]} : vector<8x8xi32> to vector<8x1xi32>
    %40 = vector.broadcast %39 : vector<8x1xi32> to vector<8x16xi32>
    %41 = arith.cmpi eq, %40, %1 : vector<8x16xi32>
    %42 = arith.extui %41 : vector<8x16xi1> to vector<8x16xi32>
    %43 = arith.sitofp %42 : vector<8x16xi32> to vector<8x16xf32>
    %44 = arith.addf %38, %43 : vector<8x16xf32>
    %45 = vector.extract_strided_slice %0 {offsets = [0, 7], sizes = [8, 1], strides = [1, 1]} : vector<8x8xi32> to vector<8x1xi32>
    %46 = vector.broadcast %45 : vector<8x1xi32> to vector<8x16xi32>
    %47 = arith.cmpi eq, %46, %1 : vector<8x16xi32>
    %48 = arith.extui %47 : vector<8x16xi1> to vector<8x16xi32>
    %49 = arith.sitofp %48 : vector<8x16xi32> to vector<8x16xf32>
    %50 = arith.addf %44, %49 : vector<8x16xf32>
    %c0_1 = arith.constant 0 : index
    %c0_2 = arith.constant 0 : index
    %51 = vector.load %arg6[%c0_1, %c0_2] : memref<2x128xf32, #tpu.memory_space<vmem>>, vector<2x128xf32>
    %c0_3 = arith.constant 0 : index
    %c0_4 = arith.constant 0 : index
    %52 = vector.load %arg1[%c0_3, %c0_4] : memref<8x32xf32, #tpu.memory_space<vmem>>, vector<8x32xf32>
    %53 = arith.truncf %52 : vector<8x32xf32> to vector<8x32xbf16>
    %c0_5 = arith.constant 0 : index
    %c0_6 = arith.constant 0 : index
    %54 = vector.load %arg3[%c0_5, %c0_6] : memref<32x128xbf16, #tpu.memory_space<vmem>>, vector<32x128xbf16>
    %cst_7 = arith.constant dense<0.000000e+00> : vector<8x128xf32>
    %55 = tpu.matmul %53, %54, %cst_7 {dimension_numbers = #tpu.dot_dimension_numbers<[1], [0], [0], [1], [0, 0, 1, 1], [], []>} : vector<8x32xbf16>, vector<32x128xbf16>, vector<8x128xf32> -> vector<8x128xf32>
    %56 = arith.truncf %50 : vector<8x16xf32> to vector<8x16xbf16>
    %c0_8 = arith.constant 0 : index
    %c0_9 = arith.constant 0 : index
    %57 = vector.load %arg4[%c0_8, %c0_9] : memref<16x128xbf16, #tpu.memory_space<vmem>>, vector<16x128xbf16>
    %cst_10 = arith.constant dense<0.000000e+00> : vector<8x128xf32>
    %58 = tpu.matmul %56, %57, %cst_10 {dimension_numbers = #tpu.dot_dimension_numbers<[1], [0], [0], [1], [0, 0, 1, 1], [], []>} : vector<8x16xbf16>, vector<16x128xbf16>, vector<8x128xf32> -> vector<8x128xf32>
    %59 = arith.addf %55, %58 : vector<8x128xf32>
    %60 = vector.extract_strided_slice %51 {offsets = [0, 0], sizes = [1, 128], strides = [1, 1]} : vector<2x128xf32> to vector<1x128xf32>
    %61 = vector.broadcast %60 : vector<1x128xf32> to vector<8x128xf32>
    %62 = arith.addf %59, %61 : vector<8x128xf32>
    %cst_11 = arith.constant 0.000000e+00 : f32
    %63 = vector.broadcast %cst_11 : f32 to vector<8x128xf32>
    %64 = arith.maximumf %62, %63 : vector<8x128xf32>
    %65 = arith.truncf %64 : vector<8x128xf32> to vector<8x128xbf16>
    %c0_12 = arith.constant 0 : index
    %c0_13 = arith.constant 0 : index
    %66 = vector.load %arg5[%c0_12, %c0_13] : memref<128x128xbf16, #tpu.memory_space<vmem>>, vector<128x128xbf16>
    %cst_14 = arith.constant dense<0.000000e+00> : vector<8x128xf32>
    %67 = tpu.matmul %65, %66, %cst_14 {dimension_numbers = #tpu.dot_dimension_numbers<[1], [0], [0], [1], [0, 0, 1, 1], [], []>} : vector<8x128xbf16>, vector<128x128xbf16>, vector<8x128xf32> -> vector<8x128xf32>
    %68 = vector.extract_strided_slice %51 {offsets = [1, 0], sizes = [1, 128], strides = [1, 1]} : vector<2x128xf32> to vector<1x128xf32>
    %69 = vector.broadcast %68 : vector<1x128xf32> to vector<8x128xf32>
    %70 = arith.addf %67, %69 : vector<8x128xf32>
    %c0_15 = arith.constant 0 : index
    %c0_16 = arith.constant 0 : index
    %71 = vector.load %arg7[%c0_15, %c0_16] : memref<8x128xf32, #tpu.memory_space<vmem>>, vector<8x128xf32>
    tpu.vector_store %arg7[%c0_15, %c0_16], %70 {strides = array<i32>} : memref<8x128xf32, #tpu.memory_space<vmem>>, vector<8x128xf32>,
    return
  }
  func.func @transform_0(%arg0: i32) -> (i32, i32) {
    %c0_i32 = arith.constant 0 : i32
    %c0_i32_0 = arith.constant 0 : i32
    return %arg0, %c0_i32 : i32, i32
  }
  func.func @transform_1(%arg0: i32) -> (i32, i32) {
    %c0_i32 = arith.constant 0 : i32
    %c0_i32_0 = arith.constant 0 : i32
    return %arg0, %c0_i32 : i32, i32
  }
  func.func @transform_2(%arg0: i32) -> (i32, i32) {
    %c0_i32 = arith.constant 0 : i32
    %c0_i32_0 = arith.constant 0 : i32
    %c0_i32_1 = arith.constant 0 : i32
    return %c0_i32, %c0_i32_0 : i32, i32
  }
  func.func @transform_3(%arg0: i32) -> (i32, i32) {
    %c0_i32 = arith.constant 0 : i32
    %c0_i32_0 = arith.constant 0 : i32
    %c0_i32_1 = arith.constant 0 : i32
    return %c0_i32, %c0_i32_0 : i32, i32
  }
  func.func @transform_4(%arg0: i32) -> (i32, i32) {
    %c0_i32 = arith.constant 0 : i32
    %c0_i32_0 = arith.constant 0 : i32
    %c0_i32_1 = arith.constant 0 : i32
    return %c0_i32, %c0_i32_0 : i32, i32
  }
  func.func @transform_5(%arg0: i32) -> (i32, i32) {
    %c0_i32 = arith.constant 0 : i32
    %c0_i32_0 = arith.constant 0 : i32
    %c0_i32_1 = arith.constant 0 : i32
    return %c0_i32, %c0_i32_0 : i32, i32
  }
  func.func @transform_6(%arg0: i32) -> (i32, i32) {
    %c0_i32 = arith.constant 0 : i32
    %c0_i32_0 = arith.constant 0 : i32
    return %arg0, %c0_i32 : i32, i32
  }
}

</mosaic_0001>

<llo_original>
// kernel: tpu_custom_call.1
$region0: #{tpu_custom_call.1}
  #allocation0 [shape = 'u32[]', space=smem, size = 0x4, offset = 0x4, fixed_abs, tag = 'smem constant byte address 0x4 - core index']
  #allocation1 [shape = 'u32[144,128]{1,0:T(1,128)}', space=vmem, size = 0x12000, scoped, tag = 'internal scratch']
  %s0 = inlined_call_operand.hbm [shape: f32[8,32], index: 0, kind: input, shape index: {}]
  %s1 = inlined_call_operand.hbm [shape: s32[8,8], index: 1, kind: input, shape index: {}]
  %s2 = inlined_call_operand.hbm [shape: bf16[32,128], index: 2, kind: input, shape index: {}]
  %s3 = inlined_call_operand.vmem [shape: bf16[16,128], index: 3, kind: input, shape index: {}]
  %s4 = inlined_call_operand.hbm [shape: bf16[128,128], index: 4, kind: input, shape index: {}]
  %s5 = inlined_call_operand.vmem [shape: f32[2,128], index: 5, kind: input, shape index: {}]
  %s6 = inlined_call_operand.hbm [shape: f32[8,128], index: 6, kind: output, shape index: {}]
  %s7 = sld [smem:[#allocation0]]
  $region50: #{tpu_custom_call.1} parent=0
    _
  %s9 = ssub.s32 1, %s7
  %s10 = scalar_select 0, %s9, %s7
  $region1: #{tpu_custom_call.1} parent=0
    #allocation2 [shape = 'u8[4096]{0}', space=vmem, size = 0x1000, scoped, tag = 'input window, operand 0, single buffered']
    #allocation3 [shape = 's32[1]{0}', space=sflag, size = 0x4, scoped, tag = 'scoped memory for tpu_custom_call.1']
    #allocation4 [shape = 's32[1]{0}', space=sflag, size = 0x4, scoped, tag = 'scoped memory for tpu_custom_call.1']
    #allocation5 [shape = 'u8[4096]{0}', space=vmem, size = 0x1000, scoped, tag = 'input window, operand 1, single buffered']
    #allocation6 [shape = 's32[1]{0}', space=sflag, size = 0x4, scoped, tag = 'scoped memory for tpu_custom_call.1']
    #allocation7 [shape = 'u8[8192]{0}', space=vmem, size = 0x2000, scoped, tag = 'input window, operand 2, single buffered']
    #allocation8 [shape = 'u8[32768]{0}', space=vmem, size = 0x8000, scoped, tag = 'input window, operand 4, single buffered']
    #allocation9 [shape = 's32[1]{0}', space=sflag, size = 0x4, scoped, tag = 'scoped memory for tpu_custom_call.1']
    #allocation10 [shape = 'u8[4096]{0}', space=vmem, size = 0x1000, scoped, tag = 'output window, operand 0, single buffered']
    %11 = vsyncpa [#allocation3], 0
    %12 = vsyncpa [#allocation6], 0
    %13 = vsyncpa [#allocation9], 0
    %14 = vsyncpa [#allocation4], 0
    // Predicated region
    $region2: #{tpu_custom_call.1} parent=1 // pred_check
      _
    $region3: #{tpu_custom_call.1} parent=1 // pred_check_branch
      %16 = sbr.rel (0) target = $region5
    $region4: #{tpu_custom_call.1} parent=1 // pred_region
      %s18 = ssub.s32 128, 128
      %19 = vsyncadd [#allocation3], %s18
      %s21 = sshll.u32 [#allocation2], 4
      %s22 = int_to_ptr.vmem [resolvable:$true] %s21
      %24 = dma.hbm_to_vmem [thread:$0]  %s0, 128, %s22, [#allocation3]
    $region5: #{tpu_custom_call.1} parent=1 // pred_fallthru
      _
    // Predicated region
    $region6: #{tpu_custom_call.1} parent=1 // pred_check
      _
    $region7: #{tpu_custom_call.1} parent=1 // pred_check_branch
      %26 = sbr.rel (0) target = $region9
    $region8: #{tpu_custom_call.1} parent=1 // pred_region
      %s28 = ssub.s32 128, 128
      %29 = vsyncadd [#allocation6], %s28
      %s31 = sshll.u32 [#allocation5], 4
      %s32 = int_to_ptr.vmem [resolvable:$true] %s31
      %34 = dma.hbm_to_vmem [thread:$0]  %s1, 128, %s32, [#allocation6]
    $region9: #{tpu_custom_call.1} parent=1 // pred_fallthru
      _
    // Predicated region
    $region10: #{tpu_custom_call.1} parent=1 // pred_check
      _
    $region11: #{tpu_custom_call.1} parent=1 // pred_check_branch
      %36 = sbr.rel (0) target = $region13
    $region12: #{tpu_custom_call.1} parent=1 // pred_region
      %s38 = ssub.s32 256, 256
      %39 = vsyncadd [#allocation6], %s38
      %s40 = sshll.u32 [#allocation7], 4
      %s41 = int_to_ptr.vmem [resolvable:$true] %s40
      %46 = dma.hbm_to_vmem [thread:$0]  %s2, 256, %s41, [#allocation6], 64, 64, 4
    $region13: #{tpu_custom_call.1} parent=1 // pred_fallthru
      _
    // Predicated region
    $region14: #{tpu_custom_call.1} parent=1 // pred_check
      _
    $region15: #{tpu_custom_call.1} parent=1 // pred_check_branch
      %48 = sbr.rel (0) target = $region17
    $region16: #{tpu_custom_call.1} parent=1 // pred_region
      _
    $region17: #{tpu_custom_call.1} parent=1 // pred_fallthru
      _
    // Predicated region
    $region18: #{tpu_custom_call.1} parent=1 // pred_check
      _
    $region19: #{tpu_custom_call.1} parent=1 // pred_check_branch
      %50 = sbr.rel (0) target = $region21
    $region20: #{tpu_custom_call.1} parent=1 // pred_region
      %s52 = ssub.s32 1024, 1024
      %53 = vsyncadd [#allocation9], %s52
      %s54 = sshll.u32 [#allocation8], 4
      %s55 = int_to_ptr.vmem [resolvable:$true] %s54
      %60 = dma.hbm_to_vmem [thread:$0]  %s4, 1024, %s55, [#allocation9], 64, 64, 4
    $region21: #{tpu_custom_call.1} parent=1 // pred_fallthru
      _
    // Predicated region
    $region22: #{tpu_custom_call.1} parent=1 // pred_check
      _
    $region23: #{tpu_custom_call.1} parent=1 // pred_check_branch
      %62 = sbr.rel (0) target = $region25
    $region24: #{tpu_custom_call.1} parent=1 // pred_region
      _
    $region25: #{tpu_custom_call.1} parent=1 // pred_fallthru
      _
    // Predicated region
    $region26: #{tpu_custom_call.1} parent=1 // pred_check
      _
    $region27: #{tpu_custom_call.1} parent=1 // pred_check_branch
      %64 = sbr.rel (0) target = $region29
    $region28: #{tpu_custom_call.1} parent=1 // pred_region
      %65 = dma.done [#allocation3], 128
    $region29: #{tpu_custom_call.1} parent=1 // pred_fallthru
      _
    // Predicated region
    $region30: #{tpu_custom_call.1} parent=1 // pred_check
      _
    $region31: #{tpu_custom_call.1} parent=1 // pred_check_branch
      %67 = sbr.rel (0) target = $region33
    $region32: #{tpu_custom_call.1} parent=1 // pred_region
      %68 = dma.done [#allocation6], 128
    $region33: #{tpu_custom_call.1} parent=1 // pred_fallthru
      _
    // Predicated region
    $region34: #{tpu_custom_call.1} parent=1 // pred_check
      _
    $region35: #{tpu_custom_call.1} parent=1 // pred_check_branch
      %70 = sbr.rel (0) target = $region37
    $region36: #{tpu_custom_call.1} parent=1 // pred_region
      %71 = dma.done [#allocation6], 256
    $region37: #{tpu_custom_call.1} parent=1 // pred_fallthru
      _
    // Predicated region
    $region38: #{tpu_custom_call.1} parent=1 // pred_check
      _
    $region39: #{tpu_custom_call.1} parent=1 // pred_check_branch
      %73 = sbr.rel (0) target = $region41
    $region40: #{tpu_custom_call.1} parent=1 // pred_region
      %74 = dma.done [#allocation9], 1024
    $region41: #{tpu_custom_call.1} parent=1 // pred_fallthru
      _
    %v76 = vld [vmem:[#allocation5] sm:$0xff]
    %v77 = vlaneseq
    %v78 = vand.u32 %v77, 127
    %79 = vset.pattern.permute.xlu0 0
    %80 = vperm.xlu0 %79, %v76
    %v81 = vpop.permute.xlu0 %80
    %vm82 = vcmp.eq.s32.totalorder %v81, %v78
    %v83 = vsel %vm82, 1, 0
    %v84 = vcvt.s32.f32 %v83
    %v85 = vadd.f32 %v84, 0.0
    %86 = vset.pattern.permute.xlu0 1
    %87 = vperm.xlu0 %86, %v76
    %v88 = vpop.permute.xlu0 %87
    %vm89 = vcmp.eq.s32.totalorder %v88, %v78
    %v90 = vsel %vm89, 1, 0
    %v91 = vcvt.s32.f32 %v90
    %v92 = vadd.f32 %v85, %v91
    %93 = vset.pattern.permute.xlu0 2
    %94 = vperm.xlu0 %93, %v76
    %v95 = vpop.permute.xlu0 %94
    %vm96 = vcmp.eq.s32.totalorder %v95, %v78
    %v97 = vsel %vm96, 1, 0
    %v98 = vcvt.s32.f32 %v97
    %v99 = vadd.f32 %v92, %v98
    %100 = vset.pattern.permute.xlu0 3
    %101 = vperm.xlu0 %100, %v76
    %v102 = vpop.permute.xlu0 %101
    %vm103 = vcmp.eq.s32.totalorder %v102, %v78
    %v104 = vsel %vm103, 1, 0
    %v105 = vcvt.s32.f32 %v104
    %v106 = vadd.f32 %v99, %v105
    %107 = vset.pattern.permute.xlu0 4
    %108 = vperm.xlu0 %107, %v76
    %v109 = vpop.permute.xlu0 %108
    %vm110 = vcmp.eq.s32.totalorder %v109, %v78
    %v111 = vsel %vm110, 1, 0
    %v112 = vcvt.s32.f32 %v111
    %v113 = vadd.f32 %v106, %v112
    %114 = vset.pattern.permute.xlu0 5
    %115 = vperm.xlu0 %114, %v76
    %v116 = vpop.permute.xlu0 %115
    %vm117 = vcmp.eq.s32.totalorder %v116, %v78
    %v118 = vsel %vm117, 1, 0
    %v119 = vcvt.s32.f32 %v118
    %v120 = vadd.f32 %v113, %v119
    %121 = vset.pattern.permute.xlu0 6
    %122 = vperm.xlu0 %121, %v76
    %v123 = vpop.permute.xlu0 %122
    %vm124 = vcmp.eq.s32.totalorder %v123, %v78
    %v125 = vsel %vm124, 1, 0
    %v126 = vcvt.s32.f32 %v125
    %v127 = vadd.f32 %v120, %v126
    %128 = vset.pattern.permute.xlu0 7
    %129 = vperm.xlu0 %128, %v76
    %v130 = vpop.permute.xlu0 %129
    %vm131 = vcmp.eq.s32.totalorder %v130, %v78
    %v132 = vsel %vm131, 1, 0
    %v133 = vcvt.s32.f32 %v132
    %v134 = vadd.f32 %v127, %v133
    %v135 = vld [vmem:[%s5] sm:$0x3]
    %v136 = vld [vmem:[#allocation2] sm:$0xff]
    %v137 = vpack.c.bf16 %v136, %v136
    %v138 = vld [vmem:[#allocation7] sm:$0xf]
    %v139 = vld [vmem:[#allocation7 + $0x4] sm:$0xf]
    %v140 = vld [vmem:[#allocation7 + $0x8] sm:$0xf]
    %v141 = vld [vmem:[#allocation7 + $0xc] sm:$0xf]
    %v142 = vpack.c.bf16 %v134, %v134
    %v143 = vld [vmem:[%s3] sm:$0xf]
    %v144 = vld [vmem:[%s3 + $0x4] sm:$0xf]
    %v147 = vunpack.c.l.b16 %v143
    %v148 = vunpack.c.l.b16 %v144
    %v149 = vpack.c.b16 %v148, %v147
    %vm151 = vcmask 130048
    %v153 = vsel %vm151, %v142, 0
    %155 = vmatprep.subr.bf16.mxu0 0
    %156 = vmatpush1.bf16.msra.mxu0 %v149
    %157 = vmatprep.subr.bf16.mxu0 0
    %158 = vmatpush1.bf16.msra.mxu0 0
    %159 = vmatprep.subr.bf16.mxu0 0
    %160 = vmatpush1.bf16.msra.mxu0 0
    %161 = vmatprep.subr.bf16.mxu0 0
    %162 = vmatpush1.bf16.msra.mxu0 0
    %163 = vmatprep.subr.bf16.mxu0 0
    %164 = vmatpush1.bf16.msra.mxu0 0
    %165 = vmatprep.subr.bf16.mxu0 0
    %166 = vmatpush1.bf16.msra.mxu0 0
    %167 = vmatprep.subr.bf16.mxu0 0
    %168 = vmatpush1.bf16.msra.mxu0 0
    %169 = vmatprep.subr.bf16.mxu0 0
    %170 = vmatpush1.bf16.msra.mxu0 0
    %171 = vmatprep.subr.bf16.mxu0 0
    %172 = vmatpush1.bf16.msra.mxu0 0
    %173 = vmatprep.subr.bf16.mxu0 0
    %174 = vmatpush1.bf16.msra.mxu0 0
    %175 = vmatprep.subr.bf16.mxu0 0
    %176 = vmatpush1.bf16.msra.mxu0 0
    %177 = vmatprep.subr.bf16.mxu0 0
    %178 = vmatpush1.bf16.msra.mxu0 0
    %179 = vmatprep.subr.bf16.mxu0 0
    %180 = vmatpush1.bf16.msra.mxu0 0
    %181 = vmatprep.subr.bf16.mxu0 0
    %182 = vmatpush1.bf16.msra.mxu0 0
    %183 = vmatprep.subr.bf16.mxu0 0
    %184 = vmatpush1.bf16.msra.mxu0 0
    %185 = vmatprep.subr.bf16.mxu0 0
    %186 = vmatpush1.bf16.msra.mxu0 0
    %187 = vmatprep.mubr.bf16.mxu0 0
    %188 = vmatmul.mubr.bf16.gmra.mrb[0].mxu0 %v153
    %v189 = vpop.f32.mrb[0].mxu0
    %v190 = vadd.f32 0.0, %v189
    %v191 = vpop.f32.mrb[0].mxu0
    %v192 = vpop.f32.mrb[0].mxu0
    %v193 = vpop.f32.mrb[0].mxu0
    %194 = vdwg.mxu0
    %v199 = vunpack.c.l.b16 %v138
    %v200 = vunpack.c.l.b16 %v139
    %v201 = vunpack.c.l.b16 %v140
    %v202 = vunpack.c.l.b16 %v141
    %v203 = vpack.c.b16 %v200, %v199
    %v204 = vpack.c.b16 %v202, %v201
    %vm207 = vcmask 261120
    %v209 = vsel %vm207, %v137, 0
    %211 = vmatprep.subr.bf16.mxu0 0
    %212 = vmatpush1.bf16.msra.mxu0 %v203
    %213 = vmatprep.subr.bf16.mxu0 0
    %214 = vmatpush1.bf16.msra.mxu0 %v204
    %215 = vmatprep.subr.bf16.mxu0 0
    %216 = vmatpush1.bf16.msra.mxu0 0
    %217 = vmatprep.subr.bf16.mxu0 0
    %218 = vmatpush1.bf16.msra.mxu0 0
    %219 = vmatprep.subr.bf16.mxu0 0
    %220 = vmatpush1.bf16.msra.mxu0 0
    %221 = vmatprep.subr.bf16.mxu0 0
    %222 = vmatpush1.bf16.msra.mxu0 0
    %223 = vmatprep.subr.bf16.mxu0 0
    %224 = vmatpush1.bf16.msra.mxu0 0
    %225 = vmatprep.subr.bf16.mxu0 0
    %226 = vmatpush1.bf16.msra.mxu0 0
    %227 = vmatprep.subr.bf16.mxu0 0
    %228 = vmatpush1.bf16.msra.mxu0 0
    %229 = vmatprep.subr.bf16.mxu0 0
    %230 = vmatpush1.bf16.msra.mxu0 0
    %231 = vmatprep.subr.bf16.mxu0 0
    %232 = vmatpush1.bf16.msra.mxu0 0
    %233 = vmatprep.subr.bf16.mxu0 0
    %234 = vmatpush1.bf16.msra.mxu0 0
    %235 = vmatprep.subr.bf16.mxu0 0
    %236 = vmatpush1.bf16.msra.mxu0 0
    %237 = vmatprep.subr.bf16.mxu0 0
    %238 = vmatpush1.bf16.msra.mxu0 0
    %239 = vmatprep.subr.bf16.mxu0 0
    %240 = vmatpush1.bf16.msra.mxu0 0
    %241 = vmatprep.subr.bf16.mxu0 0
    %242 = vmatpush1.bf16.msra.mxu0 0
    %243 = vmatprep.mubr.bf16.mxu0 0
    %244 = vmatmul.mubr.bf16.gmra.mrb[0].mxu0 %v209
    %v245 = vpop.f32.mrb[0].mxu0
    %v246 = vadd.f32 %v190, %v245
    %v247 = vpop.f32.mrb[0].mxu0
    %v248 = vpop.f32.mrb[0].mxu0
    %v249 = vpop.f32.mrb[0].mxu0
    %250 = vdwg.mxu0
    %v251 = vlaneseq
    %v252 = vshrl.u32 %v251, 7
    %v253 = vsub.s32 0, %v252
    %v254 = vrot.slane %v135, %v253
    %v255 = vadd.f32 %v246, %v254
    %v256 = vmax.f32 %v255, 0.0
    %v257 = vpack.c.bf16 %v256, %v256
    %v258 = vld [vmem:[#allocation8] sm:$0xf]
    %v259 = vld [vmem:[#allocation8 + $0x4] sm:$0xf]
    %v260 = vld [vmem:[#allocation8 + $0x8] sm:$0xf]
    %v261 = vld [vmem:[#allocation8 + $0xc] sm:$0xf]
    %v262 = vld [vmem:[#allocation8 + $0x10] sm:$0xf]
    %v263 = vld [vmem:[#allocation8 + $0x14] sm:$0xf]
    %v264 = vld [vmem:[#allocation8 + $0x18] sm:$0xf]
    %v265 = vld [vmem:[#allocation8 + $0x1c] sm:$0xf]
    %v266 = vld [vmem:[#allocation8 + $0x20] sm:$0xf]
    %v267 = vld [vmem:[#allocation8 + $0x24] sm:$0xf]
    %v268 = vld [vmem:[#allocation8 + $0x28] sm:$0xf]
    %v269 = vld [vmem:[#allocation8 + $0x2c] sm:$0xf]
    %v270 = vld [vmem:[#allocation8 + $0x30] sm:$0xf]
    %v271 = vld [vmem:[#allocation8 + $0x34] sm:$0xf]
    %v272 = vld [vmem:[#allocation8 + $0x38] sm:$0xf]
    %v273 = vld [vmem:[#allocation8 + $0x3c] sm:$0xf]
    %v274 = vlaneseq
    %v275 = vshrl.u32 %v274, 7
    %v276 = vsub.s32 1, %v275
    %v277 = vrot.slane %v135, %v276
    %v294 = vunpack.c.l.b16 %v258
    %v295 = vunpack.c.l.b16 %v259
    %v296 = vunpack.c.l.b16 %v260
    %v297 = vunpack.c.l.b16 %v261
    %v298 = vunpack.c.l.b16 %v262
    %v299 = vunpack.c.l.b16 %v263
    %v300 = vunpack.c.l.b16 %v264
    %v301 = vunpack.c.l.b16 %v265
    %v302 = vunpack.c.l.b16 %v266
    %v303 = vunpack.c.l.b16 %v267
    %v304 = vunpack.c.l.b16 %v268
    %v305 = vunpack.c.l.b16 %v269
    %v306 = vunpack.c.l.b16 %v270
    %v307 = vunpack.c.l.b16 %v271
    %v308 = vunpack.c.l.b16 %v272
    %v309 = vunpack.c.l.b16 %v273
    %v310 = vpack.c.b16 %v295, %v294
    %v311 = vpack.c.b16 %v297, %v296
    %v312 = vpack.c.b16 %v299, %v298
    %v313 = vpack.c.b16 %v301, %v300
    %v314 = vpack.c.b16 %v303, %v302
    %v315 = vpack.c.b16 %v305, %v304
    %v316 = vpack.c.b16 %v307, %v306
    %v317 = vpack.c.b16 %v309, %v308
    %326 = vmatprep.subr.bf16.mxu0 0
    %327 = vmatpush1.bf16.msra.mxu0 %v310
    %328 = vmatprep.subr.bf16.mxu0 0
    %329 = vmatpush1.bf16.msra.mxu0 %v311
    %330 = vmatprep.subr.bf16.mxu0 0
    %331 = vmatpush1.bf16.msra.mxu0 %v312
    %332 = vmatprep.subr.bf16.mxu0 0
    %333 = vmatpush1.bf16.msra.mxu0 %v313
    %334 = vmatprep.subr.bf16.mxu0 0
    %335 = vmatpush1.bf16.msra.mxu0 %v314
    %336 = vmatprep.subr.bf16.mxu0 0
    %337 = vmatpush1.bf16.msra.mxu0 %v315
    %338 = vmatprep.subr.bf16.mxu0 0
    %339 = vmatpush1.bf16.msra.mxu0 %v316
    %340 = vmatprep.subr.bf16.mxu0 0
    %341 = vmatpush1.bf16.msra.mxu0 %v317
    %342 = vmatprep.subr.bf16.mxu0 0
    %343 = vmatpush1.bf16.msra.mxu0 0
    %344 = vmatprep.subr.bf16.mxu0 0
    %345 = vmatpush1.bf16.msra.mxu0 0
    %346 = vmatprep.subr.bf16.mxu0 0
    %347 = vmatpush1.bf16.msra.mxu0 0
    %348 = vmatprep.subr.bf16.mxu0 0
    %349 = vmatpush1.bf16.msra.mxu0 0
    %350 = vmatprep.subr.bf16.mxu0 0
    %351 = vmatpush1.bf16.msra.mxu0 0
    %352 = vmatprep.subr.bf16.mxu0 0
    %353 = vmatpush1.bf16.msra.mxu0 0
    %354 = vmatprep.subr.bf16.mxu0 0
    %355 = vmatpush1.bf16.msra.mxu0 0
    %356 = vmatprep.subr.bf16.mxu0 0
    %357 = vmatpush1.bf16.msra.mxu0 0
    %358 = vmatprep.mubr.bf16.mxu0 0
    %359 = vmatmul.mubr.bf16.gmra.mrb[0].mxu0 %v257
    %v360 = vpop.f32.mrb[0].mxu0
    %v361 = vadd.f32 %v277, %v360
    %v362 = vpop.f32.mrb[0].mxu0
    %v363 = vpop.f32.mrb[0].mxu0
    %v364 = vpop.f32.mrb[0].mxu0
    %365 = vdwg.mxu0
    %366 = vst [vmem:[#allocation10] sm:$0xff] %v361
    // Predicated region
    $region42: #{tpu_custom_call.1} parent=1 // pred_check
      _
    $region43: #{tpu_custom_call.1} parent=1 // pred_check_branch
      %368 = sbr.rel (0) target = $region45
    $region44: #{tpu_custom_call.1} parent=1 // pred_region
      %s370 = ssub.s32 128, 128
      %371 = vsyncadd [#allocation4], %s370
      %s373 = sshll.u32 [#allocation10], 4
      %s374 = int_to_ptr.vmem [resolvable:$true] %s373
      %376 = dma.vmem_to_hbm [thread:$0]  %s374, 128, %s6, [#allocation4]
    $region45: #{tpu_custom_call.1} parent=1 // pred_fallthru
      _
    // Predicated region
    $region46: #{tpu_custom_call.1} parent=1 // pred_check
      _
    $region47: #{tpu_custom_call.1} parent=1 // pred_check_branch
      %378 = sbr.rel (0) target = $region49
    $region48: #{tpu_custom_call.1} parent=1 // pred_region
      %379 = dma.done [#allocation4], 128
    $region49: #{tpu_custom_call.1} parent=1 // pred_fallthru
      _
    %380 = vsyncpa [#allocation3], 1
    %381 = vsyncpa [#allocation6], 1
    %382 = vsyncpa [#allocation9], 1
    %383 = vsyncpa [#allocation4], 1

</llo_original>
